<compile_context>
chip_gen: v6e
topology: v6e:2x2x1
jax: 0.10.0
libtpu: 0.0.40
codegen_flags: <defaults>
</compile_context>

<pallas_src>
import jax
import jax.numpy as jnp
from jax.experimental import pallas as pl
from jax.experimental.pallas import tpu as pltpu

_LANE = 128
_SMALL_BYTES = 4 * 1024 * 1024      # below this total x+out footprint -> 1-step path
_MAX_BUF_BYTES = 24 * 1024 * 1024   # cap on double-buffered block footprint (v7x-safe)


def _out_block_kernel_tiled(x_ref, w_ref, b_ref, o_ref):
    # x_ref: (C_in, TS), w_ref: (C_out, C_in), b_ref: (C_out, 1), o_ref: (C_out, TS)
    acc = jnp.dot(w_ref[...], x_ref[...], preferred_element_type=jnp.float32)
    o_ref[...] = (acc + b_ref[...]).astype(o_ref.dtype)


def _out_block_kernel_small(x_ref, w_ref, b_ref, o_ref):
    # Whole problem in one block.
    # x_ref: (N, C_in, S), w_ref: (C_out, C_in), b_ref: (C_out, 1), o_ref: (N, C_out, S)
    w = w_ref[...]
    b = b_ref[...]
    for n in range(x_ref.shape[0]):  # N is small on this path (static unroll)
        acc = jnp.dot(w, x_ref[n], preferred_element_type=jnp.float32)
        o_ref[n] = (acc + b).astype(o_ref.dtype)


def unet_out_block(x_nchw, weight, bias, *, tile_s=131072,
                   small_path_bytes=_SMALL_BYTES):
    """1x1 conv with bias, NCHW in / NCHW out.

    x_nchw:  (N, C_in, H, W)
    weight:  (C_out, C_in) or (C_out, C_in, 1, 1)   (nn.Conv2d layout)
    bias:    (C_out,)
    returns: (N, C_out, H, W)
    """
    N, C_in, H, W = x_nchw.shape
    if weight.ndim == 4:  # nn.Conv2d stores (C_out, C_in, 1, 1)
        weight = weight.reshape(weight.shape[0], weight.shape[1])
    C_out = weight.shape[0]
    S = H * W
    itemsize = jnp.dtype(x_nchw.dtype).itemsize

    # Pure reshapes: no HBM traffic, layout stays NCHW-contiguous.
    x3d = x_nchw.reshape(N, C_in, S)
    b2d = bias.reshape(C_out, 1)

    flops = 2 * N * S * C_in * C_out
    bytes_accessed = (itemsize * N * S * (C_in + C_out)
                      + itemsize * (C_out * C_in + C_out))
    cost = pl.CostEstimate(flops=flops, transcendentals=0,
                           bytes_accessed=bytes_accessed)

    total_io_bytes = itemsize * N * S * (C_in + C_out)

    # ---------------- Small-problem fast path: one grid step. ----------------
    if total_io_bytes <= small_path_bytes:
        out3d = pl.pallas_call(
            _out_block_kernel_small,
            out_shape=jax.ShapeDtypeStruct((N, C_out, S), x_nchw.dtype),
            grid_spec=pltpu.PrefetchScalarGridSpec(
                num_scalar_prefetch=0,
                grid=(1,),
                in_specs=[
                    pl.BlockSpec((N, C_in, S), lambda i: (0, 0, 0)),
                    pl.BlockSpec((C_out, C_in), lambda i: (0, 0)),
                    pl.BlockSpec((C_out, 1), lambda i: (0, 0)),
                ],
                out_specs=pl.BlockSpec((N, C_out, S), lambda i: (0, 0, 0)),
            ),
            compiler_params=pltpu.CompilerParams(
                dimension_semantics=("arbitrary",),
            ),
            cost_estimate=cost,
        )(x3d, weight, b2d)
        return out3d.reshape(N, C_out, H, W)

    # ------------------- Streaming path: tile the spatial axis. --------------
    ts = min(int(tile_s), S)
    if ts < S:
        # Lane-dense tiles: round user-supplied sizes down to a 128 multiple.
        ts = max(_LANE, (ts // _LANE) * _LANE)

    # Cap double-buffered x + out block footprint (VMEM-safe on all chips).
    while ts > _LANE and 2 * (C_in + C_out) * ts * itemsize > _MAX_BUF_BYTES:
        ts = max(_LANE, ((ts // 2) // _LANE) * _LANE)

    # Keep >= 2 grid steps so both v7x TensorCores ("parallel" axes) get work.
    if N * pl.cdiv(S, ts) < 2 and S > 2 * _LANE:
        ts = max(_LANE, ((S // 2) // _LANE) * _LANE)

    grid = (N, pl.cdiv(S, ts))

    buf_bytes = 2 * (C_in + C_out) * ts * itemsize \
        + 2 * (C_out * C_in + C_out) * itemsize
    vmem_limit = int(min(max(buf_bytes + (4 << 20), 16 << 20), 32 << 20))

    out3d = pl.pallas_call(
        _out_block_kernel_tiled,
        out_shape=jax.ShapeDtypeStruct((N, C_out, S), x_nchw.dtype),
        grid_spec=pltpu.PrefetchScalarGridSpec(
            num_scalar_prefetch=0,
            grid=grid,
            in_specs=[
                # batch dim squeezed out; spatial axis tiled on lanes.
                pl.BlockSpec((None, C_in, ts), lambda n, s: (n, 0, s)),
                # weight + bias: resident (constant index_map).
                pl.BlockSpec((C_out, C_in), lambda n, s: (0, 0)),
                pl.BlockSpec((C_out, 1), lambda n, s: (0, 0)),
            ],
            out_specs=pl.BlockSpec((None, C_out, ts), lambda n, s: (n, 0, s)),
        ),
        compiler_params=pltpu.CompilerParams(
            dimension_semantics=("parallel", "parallel"),
            vmem_limit_bytes=vmem_limit,
        ),
        cost_estimate=cost,
    )(x3d, weight, b2d)

    return out3d.reshape(N, C_out, H, W)


if __name__ == "__main__":
    # UnetOutBlock(spatial_dims=2, in_channels=8, out_channels=4)
    N, C_in, C_out, HW = 2, 8, 4, 16

    key = jax.random.PRNGKey(0)
    kx, kw, kb = jax.random.split(key, 3)

    x = jax.random.normal(kx, (N, C_in, HW, HW), dtype=jnp.float32)
    # Parameter shapes match nn.Conv2d(C_in, C_out, kernel_size=1, bias=True).
    weight = jax.random.normal(kw, (C_out, C_in, 1, 1), dtype=jnp.float32) * 0.1
    bias = jax.random.normal(kb, (C_out,), dtype=jnp.float32) * 0.1
    w2d = weight.reshape(C_out, C_in)

    # Path 1: small-problem single-step path (default for these shapes).
    out_small = jax.block_until_ready(unet_out_block(x, weight, bias))
    ref = jnp.einsum("nihw,oi->nohw", x, w2d) + bias[None, :, None, None]
    assert out_small.shape == (N, C_out, HW, HW)
    assert jnp.allclose(out_small, ref, atol=1e-5, rtol=1e-5)

    # Path 2: exercise the tiled streaming path (including a ragged last tile)
    # on small shapes by disabling the small-problem shortcut.
    x2 = jax.random.normal(kx, (1, C_in, 24, 24), dtype=jnp.float32)  # S = 576
    out_tiled = jax.block_until_ready(
        unet_out_block(x2, weight, bias, tile_s=256, small_path_bytes=0))
    ref2 = jnp.einsum("nihw,oi->nohw", x2, w2d) + bias[None, :, None, None]
    assert out_tiled.shape == (1, C_out, 24, 24)
    assert jnp.allclose(out_tiled, ref2, atol=1e-5, rtol=1e-5)

    print("KERNEL_OK")
</pallas_src>

<mosaic_0001>
module attributes {stable_mosaic.version = 11 : i64} {
  func.func @_out_block_kernel_small(%arg0: i32, %arg1: memref<2x8x256xf32, #tpu.memory_space<vmem>>, %arg2: memref<4x8xf32, #tpu.memory_space<vmem>>, %arg3: memref<4x1xf32, #tpu.memory_space<vmem>>, %arg4: memref<2x4x256xf32, #tpu.memory_space<vmem>>) attributes {dimension_semantics = [#tpu.dimension_semantics<arbitrary>], iteration_bounds = array<i64: 1>, scalar_prefetch = 0 : i64, scratch_operands = 0 : i64, tpu.core_type = #tpu.core_type<tc>, window_params = [{pipeline_mode = #tpu.pipeline_mode<synchronous>, transform_indices = @transform_0, window_bounds = array<i64: 2, 8, 256>}, {pipeline_mode = #tpu.pipeline_mode<synchronous>, transform_indices = @transform_1, window_bounds = array<i64: 4, 8>}, {pipeline_mode = #tpu.pipeline_mode<synchronous>, transform_indices = @transform_2, window_bounds = array<i64: 4, 1>}, {pipeline_mode = #tpu.pipeline_mode<synchronous>, transform_indices = @transform_3, window_bounds = array<i64: 2, 4, 256>}]} {
    %c0 = arith.constant 0 : index
    %c0_0 = arith.constant 0 : index
    %0 = vector.load %arg2[%c0, %c0_0] : memref<4x8xf32, #tpu.memory_space<vmem>>, vector<4x8xf32>
    %c0_1 = arith.constant 0 : index
    %c0_2 = arith.constant 0 : index
    %1 = vector.load %arg3[%c0_1, %c0_2] : memref<4x1xf32, #tpu.memory_space<vmem>>, vector<4x1xf32>
    %c0_3 = arith.constant 0 : index
    %c0_4 = arith.constant 0 : index
    %c0_5 = arith.constant 0 : index
    %2 = vector.load %arg1[%c0_3, %c0_4, %c0_5] : memref<2x8x256xf32, #tpu.memory_space<vmem>>, vector<1x8x256xf32>
    %3 = vector.shape_cast %2 : vector<1x8x256xf32> to vector<8x256xf32>
    %cst = arith.constant dense<0.000000e+00> : vector<4x256xf32>
    %4 = tpu.matmul %0, %3, %cst {dimension_numbers = #tpu.dot_dimension_numbers<[1], [0], [0], [1], [0, 0, 1, 1], [], []>} : vector<4x8xf32>, vector<8x256xf32>, vector<4x256xf32> -> vector<4x256xf32>
    %5 = vector.broadcast %1 : vector<4x1xf32> to vector<4x256xf32>
    %6 = arith.addf %4, %5 : vector<4x256xf32>
    %c0_6 = arith.constant 0 : index
    %c0_7 = arith.constant 0 : index
    %c0_8 = arith.constant 0 : index
    %7 = vector.load %arg4[%c0_6, %c0_7, %c0_8] : memref<2x4x256xf32, #tpu.memory_space<vmem>>, vector<1x4x256xf32>
    %8 = vector.shape_cast %7 : vector<1x4x256xf32> to vector<4x256xf32>
    %9 = vector.shape_cast %6 : vector<4x256xf32> to vector<1x4x256xf32>
    tpu.vector_store %arg4[%c0_6, %c0_7, %c0_8], %9 {strides = array<i32>} : memref<2x4x256xf32, #tpu.memory_space<vmem>>, vector<1x4x256xf32>,
    %c1 = arith.constant 1 : index
    %c0_9 = arith.constant 0 : index
    %c0_10 = arith.constant 0 : index
    %10 = vector.load %arg1[%c1, %c0_9, %c0_10] : memref<2x8x256xf32, #tpu.memory_space<vmem>>, vector<1x8x256xf32>
    %11 = vector.shape_cast %10 : vector<1x8x256xf32> to vector<8x256xf32>
    %cst_11 = arith.constant dense<0.000000e+00> : vector<4x256xf32>
    %12 = tpu.matmul %0, %11, %cst_11 {dimension_numbers = #tpu.dot_dimension_numbers<[1], [0], [0], [1], [0, 0, 1, 1], [], []>} : vector<4x8xf32>, vector<8x256xf32>, vector<4x256xf32> -> vector<4x256xf32>
    %13 = vector.broadcast %1 : vector<4x1xf32> to vector<4x256xf32>
    %14 = arith.addf %12, %13 : vector<4x256xf32>
    %c1_12 = arith.constant 1 : index
    %c0_13 = arith.constant 0 : index
    %c0_14 = arith.constant 0 : index
    %15 = vector.load %arg4[%c1_12, %c0_13, %c0_14] : memref<2x4x256xf32, #tpu.memory_space<vmem>>, vector<1x4x256xf32>
    %16 = vector.shape_cast %15 : vector<1x4x256xf32> to vector<4x256xf32>
    %17 = vector.shape_cast %14 : vector<4x256xf32> to vector<1x4x256xf32>
    tpu.vector_store %arg4[%c1_12, %c0_13, %c0_14], %17 {strides = array<i32>} : memref<2x4x256xf32, #tpu.memory_space<vmem>>, vector<1x4x256xf32>,
    return
  }
  func.func @transform_0(%arg0: i32) -> (i32, i32, i32) {
    %c0_i32 = arith.constant 0 : i32
    %c0_i32_0 = arith.constant 0 : i32
    %c0_i32_1 = arith.constant 0 : i32
    %c0_i32_2 = arith.constant 0 : i32
    return %c0_i32, %c0_i32_0, %c0_i32_1 : i32, i32, i32
  }
  func.func @transform_1(%arg0: i32) -> (i32, i32) {
    %c0_i32 = arith.constant 0 : i32
    %c0_i32_0 = arith.constant 0 : i32
    %c0_i32_1 = arith.constant 0 : i32
    return %c0_i32, %c0_i32_0 : i32, i32
  }
  func.func @transform_2(%arg0: i32) -> (i32, i32) {
    %c0_i32 = arith.constant 0 : i32
    %c0_i32_0 = arith.constant 0 : i32
    %c0_i32_1 = arith.constant 0 : i32
    return %c0_i32, %c0_i32_0 : i32, i32
  }
  func.func @transform_3(%arg0: i32) -> (i32, i32, i32) {
    %c0_i32 = arith.constant 0 : i32
    %c0_i32_0 = arith.constant 0 : i32
    %c0_i32_1 = arith.constant 0 : i32
    %c0_i32_2 = arith.constant 0 : i32
    return %c0_i32, %c0_i32_0, %c0_i32_1 : i32, i32, i32
  }
}

</mosaic_0001>

<llo_original>
// kernel: tpu_custom_call.1
$region0: #{tpu_custom_call.1}
  #allocation0 [shape = 'u32[]', space=smem, size = 0x4, offset = 0x4, fixed_abs, tag = 'smem constant byte address 0x4 - core index']
  #allocation1 [shape = 'u32[144,128]{1,0:T(1,128)}', space=vmem, size = 0x12000, scoped, tag = 'internal scratch']
  %s0 = inlined_call_operand.hbm [shape: f32[2,8,256], index: 0, kind: input, shape index: {}]
  %s1 = inlined_call_operand.vmem [shape: f32[4,8], index: 1, kind: input, shape index: {}]
  %s2 = inlined_call_operand.vmem [shape: f32[4,1], index: 2, kind: input, shape index: {}]
  %s3 = inlined_call_operand.hbm [shape: f32[2,4,256], index: 3, kind: output, shape index: {}]
  %s4 = sld [smem:[#allocation0]]
  $region26: #{tpu_custom_call.1} parent=0
    _
  %s6 = ssub.s32 1, %s4
  %s7 = scalar_select 0, %s6, %s4
  $region1: #{tpu_custom_call.1} parent=0
    #allocation2 [shape = 'u8[16384]{0}', space=vmem, size = 0x4000, scoped, tag = 'input window, operand 0, single buffered']
    #allocation3 [shape = 's32[1]{0}', space=sflag, size = 0x4, scoped, tag = 'scoped memory for tpu_custom_call.1']
    #allocation4 [shape = 's32[1]{0}', space=sflag, size = 0x4, scoped, tag = 'scoped memory for tpu_custom_call.1']
    #allocation5 [shape = 'u8[8192]{0}', space=vmem, size = 0x2000, scoped, tag = 'output window, operand 0, single buffered']
    %8 = vsyncpa [#allocation3], 0
    %9 = vsyncpa [#allocation4], 0
    // Predicated region
    $region2: #{tpu_custom_call.1} parent=1 // pred_check
      _
    $region3: #{tpu_custom_call.1} parent=1 // pred_check_branch
      %11 = sbr.rel (0) target = $region5
    $region4: #{tpu_custom_call.1} parent=1 // pred_region
      %s13 = ssub.s32 512, 512
      %14 = vsyncadd [#allocation3], %s13
      %s15 = sshll.u32 [#allocation2], 4
      %s16 = int_to_ptr.vmem [resolvable:$true] %s15
      %21 = dma.hbm_to_vmem [thread:$0]  %s0, 512, %s16, [#allocation3], 256, 256, 16
    $region5: #{tpu_custom_call.1} parent=1 // pred_fallthru
      _
    // Predicated region
    $region6: #{tpu_custom_call.1} parent=1 // pred_check
      _
    $region7: #{tpu_custom_call.1} parent=1 // pred_check_branch
      %23 = sbr.rel (0) target = $region9
    $region8: #{tpu_custom_call.1} parent=1 // pred_region
      _
    $region9: #{tpu_custom_call.1} parent=1 // pred_fallthru
      _
    // Predicated region
    $region10: #{tpu_custom_call.1} parent=1 // pred_check
      _
    $region11: #{tpu_custom_call.1} parent=1 // pred_check_branch
      %25 = sbr.rel (0) target = $region13
    $region12: #{tpu_custom_call.1} parent=1 // pred_region
      _
    $region13: #{tpu_custom_call.1} parent=1 // pred_fallthru
      _
    // Predicated region
    $region14: #{tpu_custom_call.1} parent=1 // pred_check
      _
    $region15: #{tpu_custom_call.1} parent=1 // pred_check_branch
      %27 = sbr.rel (0) target = $region17
    $region16: #{tpu_custom_call.1} parent=1 // pred_region
      %28 = dma.done [#allocation3], 512
    $region17: #{tpu_custom_call.1} parent=1 // pred_fallthru
      _
    %v29 = vld [vmem:[%s1] sm:$0xf]
    %v30 = vld [vmem:[%s2] sm:$0xf]
    %v31 = vld [vmem:[#allocation2] sm:$0xff]
    %v32 = vld [vmem:[#allocation2 + $0x8] sm:$0xff]
    %34 = vset.pattern.permute.xlu0 0
    %35 = vperm.xlu0 %34, %v30
    %v36 = vpop.permute.xlu0 %35
    %vm38 = vcmask 64512
    %v40 = vsel %vm38, %v29, 0
    %42 = vmatprep.subr.mxu0 0.0
    %43 = vmatpush1.msra.mxu0 0.0
    %44 = vmatprep.subr.mxu0 0.0
    %45 = vmatpush1.msra.mxu0 0.0
    %46 = vmatprep.subr.mxu0 0.0
    %47 = vmatpush1.msra.mxu0 0.0
    %48 = vmatprep.subr.mxu0 0.0
    %49 = vmatpush1.msra.mxu0 0.0
    %50 = vmatprep.subr.mxu0 0.0
    %51 = vmatpush1.msra.mxu0 0.0
    %52 = vmatprep.subr.mxu0 0.0
    %53 = vmatpush1.msra.mxu0 0.0
    %54 = vmatprep.subr.mxu0 0.0
    %55 = vmatpush1.msra.mxu0 0.0
    %56 = vmatprep.subr.mxu0 0.0
    %57 = vmatpush1.msra.mxu0 0.0
    %58 = vmatprep.subr.mxu0 0.0
    %59 = vmatpush1.msra.mxu0 0.0
    %60 = vmatprep.subr.mxu0 0.0
    %61 = vmatpush1.msra.mxu0 0.0
    %62 = vmatprep.subr.mxu0 0.0
    %63 = vmatpush1.msra.mxu0 0.0
    %64 = vmatprep.subr.mxu0 0.0
    %65 = vmatpush1.msra.mxu0 0.0
    %66 = vmatprep.subr.mxu0 0.0
    %67 = vmatpush1.msra.mxu0 0.0
    %68 = vmatprep.subr.mxu0 0.0
    %69 = vmatpush1.msra.mxu0 0.0
    %70 = vmatprep.subr.mxu0 0.0
    %71 = vmatpush1.msra.mxu0 0.0
    %72 = vmatprep.subr.mxu0 %v32
    %73 = vmatpush1.msra.mxu0 %v31
    %74 = vmatprep.subr.mxu0 0.0
    %75 = vmatpush2.msra.mxu0 0.0
    %76 = vmatprep.subr.mxu0 0.0
    %77 = vmatpush2.msra.mxu0 0.0
    %78 = vmatprep.subr.mxu0 0.0
    %79 = vmatpush2.msra.mxu0 0.0
    %80 = vmatprep.subr.mxu0 0.0
    %81 = vmatpush2.msra.mxu0 0.0
    %82 = vmatprep.subr.mxu0 0.0
    %83 = vmatpush2.msra.mxu0 0.0
    %84 = vmatprep.subr.mxu0 0.0
    %85 = vmatpush2.msra.mxu0 0.0
    %86 = vmatprep.subr.mxu0 0.0
    %87 = vmatpush2.msra.mxu0 0.0
    %88 = vmatprep.subr.mxu0 0.0
    %89 = vmatpush2.msra.mxu0 0.0
    %90 = vmatprep.subr.mxu0 0.0
    %91 = vmatpush2.msra.mxu0 0.0
    %92 = vmatprep.subr.mxu0 0.0
    %93 = vmatpush2.msra.mxu0 0.0
    %94 = vmatprep.subr.mxu0 0.0
    %95 = vmatpush2.msra.mxu0 0.0
    %96 = vmatprep.subr.mxu0 0.0
    %97 = vmatpush2.msra.mxu0 0.0
    %98 = vmatprep.subr.mxu0 0.0
    %99 = vmatpush2.msra.mxu0 0.0
    %100 = vmatprep.subr.mxu0 0.0
    %101 = vmatpush2.msra.mxu0 0.0
    %102 = vmatprep.subr.mxu0 0.0
    %103 = vmatpush2.msra.mxu0 0.0
    %104 = vmatprep.subr.mxu0 0.0
    %105 = vmatpush2.msra.mxu0 0.0
    %106 = vmatprep.mubr.f32.mxu0 0.0
    %107 = vmatmul.mubr.f32.gmra.mxu0 %v40
    %v108 = vpop.f32.mrf.mxu0
    %v109 = vadd.f32 %v36, %v108
    %v110 = vpop.f32.mrf.mxu0
    %v111 = vadd.f32 %v36, %v110
    %112 = vdwg.mxu0
    %v115 = vcombine.low %v109, %v111
    %117 = vst [vmem:[#allocation5] sm:$0xff] %v115
    %s118 = scalar_lea.vmem [#allocation2], 16
    %v119 = vld [vmem:[%s118] sm:$0xff]
    %v120 = vld [vmem:[%s118 + $0x8] sm:$0xff]
    %121 = vmatprep.subr.mxu0 0.0
    %122 = vmatpush1.msra.mxu0 0.0
    %123 = vmatprep.subr.mxu0 0.0
    %124 = vmatpush1.msra.mxu0 0.0
    %125 = vmatprep.subr.mxu0 0.0
    %126 = vmatpush1.msra.mxu0 0.0
    %127 = vmatprep.subr.mxu0 0.0
    %128 = vmatpush1.msra.mxu0 0.0
    %129 = vmatprep.subr.mxu0 0.0
    %130 = vmatpush1.msra.mxu0 0.0
    %131 = vmatprep.subr.mxu0 0.0
    %132 = vmatpush1.msra.mxu0 0.0
    %133 = vmatprep.subr.mxu0 0.0
    %134 = vmatpush1.msra.mxu0 0.0
    %135 = vmatprep.subr.mxu0 0.0
    %136 = vmatpush1.msra.mxu0 0.0
    %137 = vmatprep.subr.mxu0 0.0
    %138 = vmatpush1.msra.mxu0 0.0
    %139 = vmatprep.subr.mxu0 0.0
    %140 = vmatpush1.msra.mxu0 0.0
    %141 = vmatprep.subr.mxu0 0.0
    %142 = vmatpush1.msra.mxu0 0.0
    %143 = vmatprep.subr.mxu0 0.0
    %144 = vmatpush1.msra.mxu0 0.0
    %145 = vmatprep.subr.mxu0 0.0
    %146 = vmatpush1.msra.mxu0 0.0
    %147 = vmatprep.subr.mxu0 0.0
    %148 = vmatpush1.msra.mxu0 0.0
    %149 = vmatprep.subr.mxu0 0.0
    %150 = vmatpush1.msra.mxu0 0.0
    %151 = vmatprep.subr.mxu0 %v120
    %152 = vmatpush1.msra.mxu0 %v119
    %153 = vmatprep.subr.mxu0 0.0
    %154 = vmatpush2.msra.mxu0 0.0
    %155 = vmatprep.subr.mxu0 0.0
    %156 = vmatpush2.msra.mxu0 0.0
    %157 = vmatprep.subr.mxu0 0.0
    %158 = vmatpush2.msra.mxu0 0.0
    %159 = vmatprep.subr.mxu0 0.0
    %160 = vmatpush2.msra.mxu0 0.0
    %161 = vmatprep.subr.mxu0 0.0
    %162 = vmatpush2.msra.mxu0 0.0
    %163 = vmatprep.subr.mxu0 0.0
    %164 = vmatpush2.msra.mxu0 0.0
    %165 = vmatprep.subr.mxu0 0.0
    %166 = vmatpush2.msra.mxu0 0.0
    %167 = vmatprep.subr.mxu0 0.0
    %168 = vmatpush2.msra.mxu0 0.0
    %169 = vmatprep.subr.mxu0 0.0
    %170 = vmatpush2.msra.mxu0 0.0
    %171 = vmatprep.subr.mxu0 0.0
    %172 = vmatpush2.msra.mxu0 0.0
    %173 = vmatprep.subr.mxu0 0.0
    %174 = vmatpush2.msra.mxu0 0.0
    %175 = vmatprep.subr.mxu0 0.0
    %176 = vmatpush2.msra.mxu0 0.0
    %177 = vmatprep.subr.mxu0 0.0
    %178 = vmatpush2.msra.mxu0 0.0
    %179 = vmatprep.subr.mxu0 0.0
    %180 = vmatpush2.msra.mxu0 0.0
    %181 = vmatprep.subr.mxu0 0.0
    %182 = vmatpush2.msra.mxu0 0.0
    %183 = vmatprep.subr.mxu0 0.0
    %184 = vmatpush2.msra.mxu0 0.0
    %185 = vmatprep.mubr.f32.mxu0 0.0
    %186 = vmatmul.mubr.f32.gmra.mxu0 %v40
    %v187 = vpop.f32.mrf.mxu0
    %v188 = vadd.f32 %v36, %v187
    %v189 = vpop.f32.mrf.mxu0
    %v190 = vadd.f32 %v36, %v189
    %191 = vdwg.mxu0
    %v194 = vcombine.low %v188, %v190
    %s196 = scalar_lea.vmem [#allocation5], 8
    %197 = vst [vmem:[%s196] sm:$0xff] %v194
    // Predicated region
    $region18: #{tpu_custom_call.1} parent=1 // pred_check
      _
    $region19: #{tpu_custom_call.1} parent=1 // pred_check_branch
      %199 = sbr.rel (0) target = $region21
    $region20: #{tpu_custom_call.1} parent=1 // pred_region
      %s201 = ssub.s32 256, 256
      %202 = vsyncadd [#allocation4], %s201
      %s203 = sshll.u32 [#allocation5], 4
      %s204 = int_to_ptr.vmem [resolvable:$true] %s203
      %209 = dma.vmem_to_hbm [thread:$0]  %s204, 256, %s3, [#allocation4], 128, 128, 8
    $region21: #{tpu_custom_call.1} parent=1 // pred_fallthru
      _
    // Predicated region
    $region22: #{tpu_custom_call.1} parent=1 // pred_check
      _
    $region23: #{tpu_custom_call.1} parent=1 // pred_check_branch
      %211 = sbr.rel (0) target = $region25
    $region24: #{tpu_custom_call.1} parent=1 // pred_region
      %212 = dma.done [#allocation4], 256
    $region25: #{tpu_custom_call.1} parent=1 // pred_fallthru
      _
    %213 = vsyncpa [#allocation3], 1
    %214 = vsyncpa [#allocation4], 1

</llo_original>
